<compile_context>
chip_gen: v7x
topology: tpu7x:2x2x1
jax: 0.10.0
libtpu: 0.0.40
codegen_flags: <defaults>
</compile_context>

<pallas_src>
import functools

import jax
import jax.numpy as jnp
from jax.experimental import pallas as pl
from jax.experimental.pallas import tpu as pltpu


def _cab_kernel(x_ref, w1t_ref, w2t_ref, o_ref, *, inv_hw):
    # x_ref: (B, C, HWp); w1t_ref: (C, Cr); w2t_ref: (Cr, C); o_ref: (B, C, HWp)
    x = x_ref[...]                                              # native dtype tile

    # Global average pool over spatial: f32 accumulation only (no full-tile
    # f32 materialization).  Padded lanes (if any) are zero so the sum is
    # exact; divide by the true H*W.
    pooled = jnp.sum(x, axis=2, dtype=jnp.float32) * inv_hw     # (B, C)

    # Squeeze/excite MLP: one pair of MXU matmuls per grid step, batch on the
    # sublane axis, channels on the lane axis (weights pre-transposed on host).
    z = jnp.dot(pooled, w1t_ref[...].astype(jnp.float32),
                preferred_element_type=jnp.float32)             # (B, Cr)
    z = jnp.maximum(z, 0.0)
    s = jnp.dot(z, w2t_ref[...].astype(jnp.float32),
                preferred_element_type=jnp.float32)             # (B, C)
    # Sigmoid: exp and the approximate reciprocal both use the EUP slot.
    s = pl.reciprocal(1.0 + jnp.exp(-s), approx=True)

    # Channel-wise rescale in the input dtype (broadcast over HW lanes).
    o_ref[...] = x * s.astype(o_ref.dtype)[:, :, None]


def _choose_block_batch(n, per_sample_bytes, target_bytes, min_grid_steps):
    """Largest divisor of n giving a ~target_bytes x tile per grid step while
    keeping >= min_grid_steps steps whenever the batch allows it."""
    b = max(1, min(n, target_bytes // max(per_sample_bytes, 1)))
    if n >= min_grid_steps:
        b = min(b, max(1, n // min_grid_steps))
    while n % b:
        b -= 1
    return int(b)


def cab_forward(x, w1_4d, w2_4d, *, target_block_bytes=2 << 20, min_grid_steps=4):
    """x: (N, C, H, W) NCHW; w1_4d: (C//r, C, 1, 1); w2_4d: (C, C//r, 1, 1)."""
    n, c, h, w = x.shape
    hw = h * w
    cr = w1_4d.shape[0]

    # Flatten spatial onto the lane axis (free reshape for NCHW).  Keep the
    # output lane-dense: pad H*W to a multiple of 128 when it is not one.
    x3 = x.reshape(n, c, hw)
    hw_pad = hw
    if hw % 128:
        hw_pad = ((hw + 127) // 128) * 128
        x3 = jnp.pad(x3, ((0, 0), (0, 0), (0, hw_pad - hw)))

    # Pre-transposed weights so the in-kernel matmuls need no transpose:
    # pooled (B, C) @ w1t (C, Cr) -> (B, Cr);  z (B, Cr) @ w2t (Cr, C) -> (B, C)
    w1t = w1_4d.reshape(cr, c).T
    w2t = w2_4d.reshape(c, cr).T

    # Batch B samples per grid step so the per-step tile is ~1-4 MiB.
    itemsize = x.dtype.itemsize
    b = _choose_block_batch(n, c * hw_pad * itemsize, target_block_bytes,
                            min_grid_steps)
    block_bytes = b * c * hw_pad * itemsize
    weight_bytes = 2 * c * cr * w1t.dtype.itemsize
    # 2x double-buffered input tile + 2x output tile + weights + headroom,
    # set explicitly (defaults: 16 MiB v5e / 32 MiB v6e,v7x scoped limit).
    vmem_limit = int(min(64 << 20, 4 * block_bytes + 2 * weight_bytes + (4 << 20)))

    out3 = pl.pallas_call(
        functools.partial(_cab_kernel, inv_hw=1.0 / hw),
        out_shape=jax.ShapeDtypeStruct((n, c, hw_pad), x.dtype),
        grid=(n // b,),
        in_specs=[
            pl.BlockSpec((b, c, hw_pad), lambda i: (i, 0, 0)),   # batched x tile
            pl.BlockSpec((c, cr), lambda i: (0, 0)),             # resident weights
            pl.BlockSpec((cr, c), lambda i: (0, 0)),
        ],
        out_specs=pl.BlockSpec((b, c, hw_pad), lambda i: (i, 0, 0)),
        compiler_params=pltpu.CompilerParams(
            dimension_semantics=("parallel",),
            vmem_limit_bytes=vmem_limit),
    )(x3, w1t, w2t)

    # TODO(synk): if a single sample's (C, HW) tile ever exceeds the VMEM
    # budget (b == 1 is still too large), switch to a phase-axis grid
    # (N, 2, HW//thw): phase 0 accumulates the pooled sum into VMEM scratch,
    # phase 1 applies the rescale (HW axis "arbitrary"), so only x round-trips
    # HBM and the per-channel scales never leave VMEM.
    if hw_pad != hw:
        out3 = out3[:, :, :hw]
    return out3.reshape(n, c, h, w)


def cab_reference(x, w1_4d, w2_4d):
    """Pure-JAX mirror of the PyTorch CAB.forward (bias=False)."""
    c = x.shape[1]
    cr = w1_4d.shape[0]
    pooled = jnp.mean(x, axis=(2, 3))                            # (N, C)
    z = jnp.maximum(pooled @ w1_4d.reshape(cr, c).T, 0.0)        # (N, Cr)
    s = jax.nn.sigmoid(z @ w2_4d.reshape(c, cr).T)               # (N, C)
    return x * s[:, :, None, None]


if __name__ == "__main__":
    key = jax.random.PRNGKey(0)
    n, nc, h, w = 2, 32, 16, 16
    reduction = 8

    kx, k1, k2 = jax.random.split(key, 3)
    x = jax.random.normal(kx, (n, nc, h, w), jnp.float32)
    # PyTorch conv_du weights: (nc//r, nc, 1, 1) and (nc, nc//r, 1, 1)
    w1 = 0.1 * jax.random.normal(k1, (nc // reduction, nc, 1, 1), jnp.float32)
    w2 = 0.1 * jax.random.normal(k2, (nc, nc // reduction, 1, 1), jnp.float32)

    out = cab_forward(x, w1, w2)
    jax.block_until_ready(out)

    assert out.shape == (n, nc, h, w)
    ref = cab_reference(x, w1, w2)
    max_err = float(jnp.max(jnp.abs(out - ref)))
    assert max_err < 1e-2, f"max abs error {max_err}"
    print("KERNEL_OK")
</pallas_src>

<mosaic_0001>
module attributes {stable_mosaic.version = 11 : i64} {
  func.func @_cab_kernel(%arg0: i32, %arg1: memref<2x32x256xf32, #tpu.memory_space<vmem>>, %arg2: memref<32x4xf32, #tpu.memory_space<vmem>>, %arg3: memref<4x32xf32, #tpu.memory_space<vmem>>, %arg4: memref<2x32x256xf32, #tpu.memory_space<vmem>>) attributes {dimension_semantics = [#tpu.dimension_semantics<parallel>], iteration_bounds = array<i64: 1>, scalar_prefetch = 0 : i64, scratch_operands = 0 : i64, tpu.core_type = #tpu.core_type<tc>, window_params = [{transform_indices = @transform_0, window_bounds = array<i64: 2, 32, 256>}, {pipeline_mode = #tpu.pipeline_mode<synchronous>, transform_indices = @transform_1, window_bounds = array<i64: 32, 4>}, {pipeline_mode = #tpu.pipeline_mode<synchronous>, transform_indices = @transform_2, window_bounds = array<i64: 4, 32>}, {transform_indices = @transform_3, window_bounds = array<i64: 2, 32, 256>}]} {
    %c0 = arith.constant 0 : index
    %c0_0 = arith.constant 0 : index
    %c0_1 = arith.constant 0 : index
    %0 = vector.load %arg1[%c0, %c0_0, %c0_1] : memref<2x32x256xf32, #tpu.memory_space<vmem>>, vector<2x32x256xf32>
    %cst = arith.constant dense<0.000000e+00> : vector<2x32xf32>
    %1 = vector.multi_reduction <add>, %0, %cst [2] : vector<2x32x256xf32> to vector<2x32xf32>
    %cst_2 = arith.constant 3.906250e-03 : f32
    %2 = vector.broadcast %cst_2 : f32 to vector<2x32xf32>
    %3 = arith.mulf %1, %2 : vector<2x32xf32>
    %c0_3 = arith.constant 0 : index
    %c0_4 = arith.constant 0 : index
    %4 = vector.load %arg2[%c0_3, %c0_4] : memref<32x4xf32, #tpu.memory_space<vmem>>, vector<32x4xf32>
    %cst_5 = arith.constant dense<0.000000e+00> : vector<2x4xf32>
    %5 = tpu.matmul %3, %4, %cst_5 {dimension_numbers = #tpu.dot_dimension_numbers<[1], [0], [0], [1], [0, 0, 1, 1], [], []>} : vector<2x32xf32>, vector<32x4xf32>, vector<2x4xf32> -> vector<2x4xf32>
    %cst_6 = arith.constant 0.000000e+00 : f32
    %6 = vector.broadcast %cst_6 : f32 to vector<2x4xf32>
    %7 = arith.maximumf %5, %6 : vector<2x4xf32>
    %c0_7 = arith.constant 0 : index
    %c0_8 = arith.constant 0 : index
    %8 = vector.load %arg3[%c0_7, %c0_8] : memref<4x32xf32, #tpu.memory_space<vmem>>, vector<4x32xf32>
    %cst_9 = arith.constant dense<0.000000e+00> : vector<2x32xf32>
    %9 = tpu.matmul %7, %8, %cst_9 {dimension_numbers = #tpu.dot_dimension_numbers<[1], [0], [0], [1], [0, 0, 1, 1], [], []>} : vector<2x4xf32>, vector<4x32xf32>, vector<2x32xf32> -> vector<2x32xf32>
    %cst_10 = arith.constant 0.000000e+00 : f32
    %10 = vector.broadcast %cst_10 : f32 to vector<2x32xf32>
    %11 = arith.subf %10, %9 : vector<2x32xf32>
    %12 = math.exp %11 : vector<2x32xf32>
    %cst_11 = arith.constant 1.000000e+00 : f32
    %13 = vector.broadcast %cst_11 : f32 to vector<2x32xf32>
    %14 = arith.addf %13, %12 : vector<2x32xf32>
    %15 = tpu.reciprocal %14 {approx = true} : vector<2x32xf32> -> vector<2x32xf32>
    %16 = vector.shape_cast %15 : vector<2x32xf32> to vector<2x32x1xf32>
    %17 = vector.broadcast %16 : vector<2x32x1xf32> to vector<2x32x256xf32>
    %18 = arith.mulf %0, %17 : vector<2x32x256xf32>
    %c0_12 = arith.constant 0 : index
    %c0_13 = arith.constant 0 : index
    %c0_14 = arith.constant 0 : index
    %19 = vector.load %arg4[%c0_12, %c0_13, %c0_14] : memref<2x32x256xf32, #tpu.memory_space<vmem>>, vector<2x32x256xf32>
    tpu.vector_store %arg4[%c0_12, %c0_13, %c0_14], %18 {strides = array<i32>} : memref<2x32x256xf32, #tpu.memory_space<vmem>>, vector<2x32x256xf32>,
    return
  }
  func.func @transform_0(%arg0: i32) -> (i32, i32, i32) {
    %c0_i32 = arith.constant 0 : i32
    %c0_i32_0 = arith.constant 0 : i32
    %c0_i32_1 = arith.constant 0 : i32
    return %arg0, %c0_i32, %c0_i32_0 : i32, i32, i32
  }
  func.func @transform_1(%arg0: i32) -> (i32, i32) {
    %c0_i32 = arith.constant 0 : i32
    %c0_i32_0 = arith.constant 0 : i32
    %c0_i32_1 = arith.constant 0 : i32
    return %c0_i32, %c0_i32_0 : i32, i32
  }
  func.func @transform_2(%arg0: i32) -> (i32, i32) {
    %c0_i32 = arith.constant 0 : i32
    %c0_i32_0 = arith.constant 0 : i32
    %c0_i32_1 = arith.constant 0 : i32
    return %c0_i32, %c0_i32_0 : i32, i32
  }
  func.func @transform_3(%arg0: i32) -> (i32, i32, i32) {
    %c0_i32 = arith.constant 0 : i32
    %c0_i32_0 = arith.constant 0 : i32
    %c0_i32_1 = arith.constant 0 : i32
    return %arg0, %c0_i32, %c0_i32_0 : i32, i32, i32
  }
}

</mosaic_0001>

<llo_original>
// kernel: tpu_custom_call.1
$region0: #{tpu_custom_call.1}
  #allocation0 [shape = 'u32[]', space=smem, size = 0x4, offset = 0x4, fixed_abs, tag = 'smem constant byte address 0x4 - core index']
  #allocation1 [shape = 'u32[144,128]{1,0:T(1,128)}', space=vmem, size = 0x12000, scoped, tag = 'internal scratch']
  %s0 = inlined_call_operand.hbm [shape: f32[2,32,256], index: 0, kind: input, shape index: {}]
  %s1 = inlined_call_operand.vmem [shape: f32[32,4], index: 1, kind: input, shape index: {}]
  %s2 = inlined_call_operand.vmem [shape: f32[4,32], index: 2, kind: input, shape index: {}]
  %s3 = inlined_call_operand.hbm [shape: f32[2,32,256], index: 3, kind: output, shape index: {}]
  %s4 = sld [smem:[#allocation0]]
  $region26: #{tpu_custom_call.1} parent=0
    _
  %s6 = ssub.s32 1, %s4
  %s7 = scalar_select 0, %s6, %s4
  $region1: #{tpu_custom_call.1} parent=0
    #allocation2 [shape = 'u8[65536]{0}', space=vmem, size = 0x10000, scoped, tag = 'input window, operand 0, single buffered']
    #allocation3 [shape = 's32[1]{0}', space=sflag, size = 0x4, scoped, tag = 'scoped memory for tpu_custom_call.1']
    #allocation4 [shape = 's32[1]{0}', space=sflag, size = 0x4, scoped, tag = 'scoped memory for tpu_custom_call.1']
    #allocation5 [shape = 'u8[65536]{0}', space=vmem, size = 0x10000, scoped, tag = 'output window, operand 0, single buffered']
    %8 = vsyncpa [#allocation3], 0
    %9 = vsyncpa [#allocation4], 0
    // Predicated region
    $region2: #{tpu_custom_call.1} parent=1 // pred_check
      _
    $region3: #{tpu_custom_call.1} parent=1 // pred_check_branch
      %11 = sbr.rel (0) target = $region5
    $region4: #{tpu_custom_call.1} parent=1 // pred_region
      %s13 = ssub.s32 2048, 2048
      %14 = vsyncadd [#allocation3], %s13
      %s15 = sshll.u32 [#allocation2], 4
      %s16 = int_to_ptr.vmem [resolvable:$true] %s15
      %21 = dma.hbm_to_vmem [thread:$0]  %s0, 2048, %s16, [#allocation3], 256, 256, 16
    $region5: #{tpu_custom_call.1} parent=1 // pred_fallthru
      _
    // Predicated region
    $region6: #{tpu_custom_call.1} parent=1 // pred_check
      _
    $region7: #{tpu_custom_call.1} parent=1 // pred_check_branch
      %23 = sbr.rel (0) target = $region9
    $region8: #{tpu_custom_call.1} parent=1 // pred_region
      _
    $region9: #{tpu_custom_call.1} parent=1 // pred_fallthru
      _
    // Predicated region
    $region10: #{tpu_custom_call.1} parent=1 // pred_check
      _
    $region11: #{tpu_custom_call.1} parent=1 // pred_check_branch
      %25 = sbr.rel (0) target = $region13
    $region12: #{tpu_custom_call.1} parent=1 // pred_region
      _
    $region13: #{tpu_custom_call.1} parent=1 // pred_fallthru
      _
    // Predicated region
    $region14: #{tpu_custom_call.1} parent=1 // pred_check
      _
    $region15: #{tpu_custom_call.1} parent=1 // pred_check_branch
      %27 = sbr.rel (0) target = $region17
    $region16: #{tpu_custom_call.1} parent=1 // pred_region
      %28 = dma.done [#allocation3], 2048
    $region17: #{tpu_custom_call.1} parent=1 // pred_fallthru
      _
    %v29 = vld [vmem:[#allocation2] sm:$0xff]
    %v30 = vld [vmem:[#allocation2 + $0x8] sm:$0xff]
    %v31 = vld [vmem:[#allocation2 + $0x10] sm:$0xff]
    %v32 = vld [vmem:[#allocation2 + $0x18] sm:$0xff]
    %v33 = vld [vmem:[#allocation2 + $0x20] sm:$0xff]
    %v34 = vld [vmem:[#allocation2 + $0x28] sm:$0xff]
    %v35 = vld [vmem:[#allocation2 + $0x30] sm:$0xff]
    %v36 = vld [vmem:[#allocation2 + $0x38] sm:$0xff]
    %v37 = vld [vmem:[#allocation2 + $0x40] sm:$0xff]
    %v38 = vld [vmem:[#allocation2 + $0x48] sm:$0xff]
    %v39 = vld [vmem:[#allocation2 + $0x50] sm:$0xff]
    %v40 = vld [vmem:[#allocation2 + $0x58] sm:$0xff]
    %v41 = vld [vmem:[#allocation2 + $0x60] sm:$0xff]
    %v42 = vld [vmem:[#allocation2 + $0x68] sm:$0xff]
    %v43 = vld [vmem:[#allocation2 + $0x70] sm:$0xff]
    %v44 = vld [vmem:[#allocation2 + $0x78] sm:$0xff]
    %v45 = vadd.f32 %v29, %v30
    %46 = vadd.xlane.f32.xlu0 %v45
    %v47 = vpop.xlane.xlu0 %46
    %v48 = vadd.f32 %v31, %v32
    %49 = vadd.xlane.f32.xlu0 %v48
    %v50 = vpop.xlane.xlu0 %49
    %v51 = vadd.f32 %v33, %v34
    %52 = vadd.xlane.f32.xlu0 %v51
    %v53 = vpop.xlane.xlu0 %52
    %v54 = vadd.f32 %v35, %v36
    %55 = vadd.xlane.f32.xlu0 %v54
    %v56 = vpop.xlane.xlu0 %55
    %v57 = vadd.f32 %v37, %v38
    %58 = vadd.xlane.f32.xlu0 %v57
    %v59 = vpop.xlane.xlu0 %58
    %v60 = vadd.f32 %v39, %v40
    %61 = vadd.xlane.f32.xlu0 %v60
    %v62 = vpop.xlane.xlu0 %61
    %v63 = vadd.f32 %v41, %v42
    %64 = vadd.xlane.f32.xlu0 %v63
    %v65 = vpop.xlane.xlu0 %64
    %v66 = vadd.f32 %v43, %v44
    %67 = vadd.xlane.f32.xlu0 %v66
    %v68 = vpop.xlane.xlu0 %67
    %v69 = vmul.f32 %v47, 0.00390625
    %v70 = vmul.f32 %v50, 0.00390625
    %v71 = vmul.f32 %v53, 0.00390625
    %v72 = vmul.f32 %v56, 0.00390625
    %v73 = vmul.f32 %v59, 0.00390625
    %v74 = vmul.f32 %v62, 0.00390625
    %v75 = vmul.f32 %v65, 0.00390625
    %v76 = vmul.f32 %v68, 0.00390625
    %v77 = vld [vmem:[%s1] sm:$0xff]
    %v78 = vld [vmem:[%s1 + $0x8] sm:$0xff]
    %v79 = vld [vmem:[%s1 + $0x10] sm:$0xff]
    %v80 = vld [vmem:[%s1 + $0x18] sm:$0xff]
    %v89 = vlaneseq
    %v90 = vand.u32 %v89, 127
    %v91 = vlaneseq
    %v92 = vshrl.u32 %v91, 7
    %v93 = vsub.s32 %v90, %v92
    %v94 = vrot.slane %v69, %v93
    %v95 = vadd.s32 %v90, 4294967288
    %v96 = vlaneseq
    %v97 = vshrl.u32 %v96, 7
    %v98 = vsub.s32 %v95, %v97
    %v99 = vrot.slane %v70, %v98
    %vm100 = vcmask 130112
    %v101 = vsel %vm100, %v99, %v94
    %v102 = vadd.s32 %v90, 4294967280
    %v103 = vlaneseq
    %v104 = vshrl.u32 %v103, 7
    %v105 = vsub.s32 %v102, %v104
    %v106 = vrot.slane %v71, %v105
    %vm107 = vcmask 195712
    %v108 = vsel %vm107, %v106, %v101
    %v109 = vadd.s32 %v90, 4294967272
    %v110 = vlaneseq
    %v111 = vshrl.u32 %v110, 7
    %v112 = vsub.s32 %v109, %v111
    %v113 = vrot.slane %v72, %v112
    %vm114 = vcmask 261312
    %v115 = vsel %vm114, %v113, %v108
    %v116 = vlaneseq
    %v117 = vshrl.u32 %v116, 7
    %v118 = vsub.s32 %v90, %v117
    %v119 = vrot.slane %v73, %v118
    %v120 = vlaneseq
    %v121 = vshrl.u32 %v120, 7
    %v122 = vsub.s32 %v95, %v121
    %v123 = vrot.slane %v74, %v122
    %v124 = vsel %vm100, %v123, %v119
    %v125 = vlaneseq
    %v126 = vshrl.u32 %v125, 7
    %v127 = vsub.s32 %v102, %v126
    %v128 = vrot.slane %v75, %v127
    %v129 = vsel %vm107, %v128, %v124
    %v130 = vlaneseq
    %v131 = vshrl.u32 %v130, 7
    %v132 = vsub.s32 %v109, %v131
    %v133 = vrot.slane %v76, %v132
    %v134 = vsel %vm114, %v133, %v129
    %vm135 = vcmask 1041409
    %v136 = vsel %vm135, %v134, %v115
    %vm137 = vcmask 261120
    %v138 = vsel %vm137, %v136, 0
    %140 = vmatprep.subr.mxu0 0.0
    %141 = vmatpush1.msra.mxu0 %v77
    %142 = vmatprep.subr.mxu0 0.0
    %143 = vmatpush1.msra.mxu0 %v78
    %144 = vmatprep.subr.mxu0 0.0
    %145 = vmatpush1.msra.mxu0 %v79
    %146 = vmatprep.subr.mxu0 0.0
    %147 = vmatpush1.msra.mxu0 %v80
    %148 = vmatprep.subr.mxu0 0.0
    %149 = vmatpush1.msra.mxu0 0.0
    %150 = vmatprep.subr.mxu0 0.0
    %151 = vmatpush1.msra.mxu0 0.0
    %152 = vmatprep.subr.mxu0 0.0
    %153 = vmatpush1.msra.mxu0 0.0
    %154 = vmatprep.subr.mxu0 0.0
    %155 = vmatpush1.msra.mxu0 0.0
    %156 = vmatprep.subr.mxu0 0.0
    %157 = vmatpush1.msra.mxu0 0.0
    %158 = vmatprep.subr.mxu0 0.0
    %159 = vmatpush1.msra.mxu0 0.0
    %160 = vmatprep.subr.mxu0 0.0
    %161 = vmatpush1.msra.mxu0 0.0
    %162 = vmatprep.subr.mxu0 0.0
    %163 = vmatpush1.msra.mxu0 0.0
    %164 = vmatprep.subr.mxu0 0.0
    %165 = vmatpush1.msra.mxu0 0.0
    %166 = vmatprep.subr.mxu0 0.0
    %167 = vmatpush1.msra.mxu0 0.0
    %168 = vmatprep.subr.mxu0 0.0
    %169 = vmatpush1.msra.mxu0 0.0
    %170 = vmatprep.subr.mxu0 0.0
    %171 = vmatpush1.msra.mxu0 0.0
    %172 = vmatprep.subr.mxu0 0.0
    %173 = vmatpush1.msra.mxu0 0.0
    %174 = vmatprep.subr.mxu0 0.0
    %175 = vmatpush1.msra.mxu0 0.0
    %176 = vmatprep.subr.mxu0 0.0
    %177 = vmatpush1.msra.mxu0 0.0
    %178 = vmatprep.subr.mxu0 0.0
    %179 = vmatpush1.msra.mxu0 0.0
    %180 = vmatprep.subr.mxu0 0.0
    %181 = vmatpush1.msra.mxu0 0.0
    %182 = vmatprep.subr.mxu0 0.0
    %183 = vmatpush1.msra.mxu0 0.0
    %184 = vmatprep.subr.mxu0 0.0
    %185 = vmatpush1.msra.mxu0 0.0
    %186 = vmatprep.subr.mxu0 0.0
    %187 = vmatpush1.msra.mxu0 0.0
    %188 = vmatprep.subr.mxu0 0.0
    %189 = vmatpush1.msra.mxu0 0.0
    %190 = vmatprep.subr.mxu0 0.0
    %191 = vmatpush1.msra.mxu0 0.0
    %192 = vmatprep.subr.mxu0 0.0
    %193 = vmatpush1.msra.mxu0 0.0
    %194 = vmatprep.subr.mxu0 0.0
    %195 = vmatpush1.msra.mxu0 0.0
    %196 = vmatprep.subr.mxu0 0.0
    %197 = vmatpush1.msra.mxu0 0.0
    %198 = vmatprep.subr.mxu0 0.0
    %199 = vmatpush1.msra.mxu0 0.0
    %200 = vmatprep.subr.mxu0 0.0
    %201 = vmatpush1.msra.mxu0 0.0
    %202 = vmatprep.subr.mxu0 0.0
    %203 = vmatpush1.msra.mxu0 0.0
    %204 = vmatprep.mubr.f32.mxu0 0.0
    %205 = vmatmul.mubr.f32.gmra.mrb[0].mxu0 %v138
    %v206 = vpop.f32.mrb[0].mxu0
    %v207 = vadd.f32 0.0, %v206
    %v208 = vpop.f32.mrb[0].mxu0
    %209 = vdwg.mxu0
    %v210 = vmax.f32 %v207, 0.0
    %v211 = vld [vmem:[%s2] sm:$0xf]
    %vm212 = vcmask 31744
    %v214 = vsel %vm212, %v210, 0
    %vm216 = vcmask 1043456
    %v218 = vsel %vm216, %v211, 0
    %220 = vmatprep.subr.mxu0 0.0
    %221 = vmatpush1.msra.mxu0 %v218
    %222 = vmatprep.subr.mxu0 0.0
    %223 = vmatpush1.msra.mxu0 0.0
    %224 = vmatprep.subr.mxu0 0.0
    %225 = vmatpush1.msra.mxu0 0.0
    %226 = vmatprep.subr.mxu0 0.0
    %227 = vmatpush1.msra.mxu0 0.0
    %228 = vmatprep.subr.mxu0 0.0
    %229 = vmatpush1.msra.mxu0 0.0
    %230 = vmatprep.subr.mxu0 0.0
    %231 = vmatpush1.msra.mxu0 0.0
    %232 = vmatprep.subr.mxu0 0.0
    %233 = vmatpush1.msra.mxu0 0.0
    %234 = vmatprep.subr.mxu0 0.0
    %235 = vmatpush1.msra.mxu0 0.0
    %236 = vmatprep.subr.mxu0 0.0
    %237 = vmatpush1.msra.mxu0 0.0
    %238 = vmatprep.subr.mxu0 0.0
    %239 = vmatpush1.msra.mxu0 0.0
    %240 = vmatprep.subr.mxu0 0.0
    %241 = vmatpush1.msra.mxu0 0.0
    %242 = vmatprep.subr.mxu0 0.0
    %243 = vmatpush1.msra.mxu0 0.0
    %244 = vmatprep.subr.mxu0 0.0
    %245 = vmatpush1.msra.mxu0 0.0
    %246 = vmatprep.subr.mxu0 0.0
    %247 = vmatpush1.msra.mxu0 0.0
    %248 = vmatprep.subr.mxu0 0.0
    %249 = vmatpush1.msra.mxu0 0.0
    %250 = vmatprep.subr.mxu0 0.0
    %251 = vmatpush1.msra.mxu0 0.0
    %252 = vmatprep.subr.mxu0 0.0
    %253 = vmatpush1.msra.mxu0 0.0
    %254 = vmatprep.subr.mxu0 0.0
    %255 = vmatpush1.msra.mxu0 0.0
    %256 = vmatprep.subr.mxu0 0.0
    %257 = vmatpush1.msra.mxu0 0.0
    %258 = vmatprep.subr.mxu0 0.0
    %259 = vmatpush1.msra.mxu0 0.0
    %260 = vmatprep.subr.mxu0 0.0
    %261 = vmatpush1.msra.mxu0 0.0
    %262 = vmatprep.subr.mxu0 0.0
    %263 = vmatpush1.msra.mxu0 0.0
    %264 = vmatprep.subr.mxu0 0.0
    %265 = vmatpush1.msra.mxu0 0.0
    %266 = vmatprep.subr.mxu0 0.0
    %267 = vmatpush1.msra.mxu0 0.0
    %268 = vmatprep.subr.mxu0 0.0
    %269 = vmatpush1.msra.mxu0 0.0
    %270 = vmatprep.subr.mxu0 0.0
    %271 = vmatpush1.msra.mxu0 0.0
    %272 = vmatprep.subr.mxu0 0.0
    %273 = vmatpush1.msra.mxu0 0.0
    %274 = vmatprep.subr.mxu0 0.0
    %275 = vmatpush1.msra.mxu0 0.0
    %276 = vmatprep.subr.mxu0 0.0
    %277 = vmatpush1.msra.mxu0 0.0
    %278 = vmatprep.subr.mxu0 0.0
    %279 = vmatpush1.msra.mxu0 0.0
    %280 = vmatprep.subr.mxu0 0.0
    %281 = vmatpush1.msra.mxu0 0.0
    %282 = vmatprep.subr.mxu0 0.0
    %283 = vmatpush1.msra.mxu0 0.0
    %284 = vmatprep.mubr.f32.mxu0 0.0
    %285 = vmatmul.mubr.f32.gmra.mrb[0].mxu0 %v214
    %v286 = vpop.f32.mrb[0].mxu0
    %v287 = vadd.f32 0.0, %v286
    %v288 = vpop.f32.mrb[0].mxu0
    %289 = vdwg.mxu0
    %v290 = vsub.f32 0.0, %v287
    %v291 = vmul.f32 %v290, 1.442695
    %v292 = vpow.pop %v291
    %v293 = vadd.f32 %v292, 1.0
    %v294 = vrcp.pop %v293
    %v295 = vlaneseq
    %v296 = vshrl.u32 %v295, 7
    %v297 = vsub.s32 0, %v296
    %v298 = vrot.slane %v294, %v297
    %300 = vbcast.lane.b32.xlu0 %v298, 256
    %v301 = vpop.permute.xlu0 %300
    %s303 = sor.u32 256, 8
    %304 = vbcast.lane.b32.xlu0 %v298, %s303
    %v305 = vpop.permute.xlu0 %304
    %s307 = sor.u32 256, 16
    %308 = vbcast.lane.b32.xlu0 %v298, %s307
    %v309 = vpop.permute.xlu0 %308
    %s311 = sor.u32 256, 24
    %312 = vbcast.lane.b32.xlu0 %v298, %s311
    %v313 = vpop.permute.xlu0 %312
    %v314 = vlaneseq
    %v315 = vshrl.u32 %v314, 7
    %v316 = vsub.s32 1, %v315
    %v317 = vrot.slane %v294, %v316
    %319 = vbcast.lane.b32.xlu0 %v317, 256
    %v320 = vpop.permute.xlu0 %319
    %s322 = sor.u32 256, 8
    %323 = vbcast.lane.b32.xlu0 %v317, %s322
    %v324 = vpop.permute.xlu0 %323
    %s326 = sor.u32 256, 16
    %327 = vbcast.lane.b32.xlu0 %v317, %s326
    %v328 = vpop.permute.xlu0 %327
    %s330 = sor.u32 256, 24
    %331 = vbcast.lane.b32.xlu0 %v317, %s330
    %v332 = vpop.permute.xlu0 %331
    %v333 = vmul.f32 %v29, %v301
    %v334 = vmul.f32 %v30, %v301
    %v335 = vmul.f32 %v31, %v305
    %v336 = vmul.f32 %v32, %v305
    %v337 = vmul.f32 %v33, %v309
    %v338 = vmul.f32 %v34, %v309
    %v339 = vmul.f32 %v35, %v313
    %v340 = vmul.f32 %v36, %v313
    %v341 = vmul.f32 %v37, %v320
    %v342 = vmul.f32 %v38, %v320
    %v343 = vmul.f32 %v39, %v324
    %v344 = vmul.f32 %v40, %v324
    %v345 = vmul.f32 %v41, %v328
    %v346 = vmul.f32 %v42, %v328
    %v347 = vmul.f32 %v43, %v332
    %v348 = vmul.f32 %v44, %v332
    %349 = vst [vmem:[#allocation5] sm:$0xff] %v333
    %350 = vst [vmem:[#allocation5 + $0x8] sm:$0xff] %v334
    %351 = vst [vmem:[#allocation5 + $0x10] sm:$0xff] %v335
    %352 = vst [vmem:[#allocation5 + $0x18] sm:$0xff] %v336
    %353 = vst [vmem:[#allocation5 + $0x20] sm:$0xff] %v337
    %354 = vst [vmem:[#allocation5 + $0x28] sm:$0xff] %v338
    %355 = vst [vmem:[#allocation5 + $0x30] sm:$0xff] %v339
    %356 = vst [vmem:[#allocation5 + $0x38] sm:$0xff] %v340
    %357 = vst [vmem:[#allocation5 + $0x40] sm:$0xff] %v341
    %358 = vst [vmem:[#allocation5 + $0x48] sm:$0xff] %v342
    %359 = vst [vmem:[#allocation5 + $0x50] sm:$0xff] %v343
    %360 = vst [vmem:[#allocation5 + $0x58] sm:$0xff] %v344
    %361 = vst [vmem:[#allocation5 + $0x60] sm:$0xff] %v345
    %362 = vst [vmem:[#allocation5 + $0x68] sm:$0xff] %v346
    %363 = vst [vmem:[#allocation5 + $0x70] sm:$0xff] %v347
    %364 = vst [vmem:[#allocation5 + $0x78] sm:$0xff] %v348
    // Predicated region
    $region18: #{tpu_custom_call.1} parent=1 // pred_check
      _
    $region19: #{tpu_custom_call.1} parent=1 // pred_check_branch
      %366 = sbr.rel (0) target = $region21
    $region20: #{tpu_custom_call.1} parent=1 // pred_region
      %s368 = ssub.s32 2048, 2048
      %369 = vsyncadd [#allocation4], %s368
      %s370 = sshll.u32 [#allocation5], 4
      %s371 = int_to_ptr.vmem [resolvable:$true] %s370
      %376 = dma.vmem_to_hbm [thread:$0]  %s371, 2048, %s3, [#allocation4], 256, 256, 16
    $region21: #{tpu_custom_call.1} parent=1 // pred_fallthru
      _
    // Predicated region
    $region22: #{tpu_custom_call.1} parent=1 // pred_check
      _
    $region23: #{tpu_custom_call.1} parent=1 // pred_check_branch
      %378 = sbr.rel (0) target = $region25
    $region24: #{tpu_custom_call.1} parent=1 // pred_region
      %379 = dma.done [#allocation4], 2048
    $region25: #{tpu_custom_call.1} parent=1 // pred_fallthru
      _
    %380 = vsyncpa [#allocation3], 1
    %381 = vsyncpa [#allocation4], 1

</llo_original>
